<compile_context>
chip_gen: v7x
topology: tpu7x:2x2x1
jax: 0.10.0
libtpu: 0.0.40
codegen_flags: <defaults>
</compile_context>

<pallas_src>
import functools

import jax
import jax.numpy as jnp
from jax.experimental import pallas as pl
from jax.experimental.pallas import tpu as pltpu

SMOOTH = 1.0
_TF_MAX = 8192            # max feature-tile width (lanes), multiple of 128
_BLOCK_BUDGET = 4 << 20   # target bytes of (x + t) per block; ~16 MiB in flight
                          # with double buffering -> fits the default scoped
                          # VMEM limit on v5e / v6e / v7x.


def _dice_partial_kernel(x_ref, t_ref, inter_ref, s1_ref, s2_ref, *,
                         feat, tiles_per_core, tile_f):
    """Grid: (cores, feature-tiles-per-core); axis0 'parallel', axis1 'arbitrary'.

    Accumulates per-sample partial sums over this core's slice of the
    flattened feature dim directly into its (1, num, 1) output blocks
    (resident across the 'arbitrary' axis).
    """
    c = pl.program_id(0)
    k = pl.program_id(1)

    @pl.when(k == 0)
    def _():
        inter_ref[...] = jnp.zeros_like(inter_ref)
        s1_ref[...] = jnp.zeros_like(s1_ref)
        s2_ref[...] = jnp.zeros_like(s2_ref)

    # Global feature offset of this tile (may be a partial tail tile, or a
    # fully out-of-range tile on the last core); mask out-of-range lanes.
    start = (c * tiles_per_core + k) * tile_f
    col = jax.lax.broadcasted_iota(jnp.int32, x_ref.shape, 1)
    mask = (start + col) < feat

    # Mask AFTER the sigmoid: where() selects, so garbage / NaN in padded tail
    # lanes cannot leak into the sums (and sigmoid(0)=0.5 would otherwise bias
    # s1 if we only masked the logits).
    p = jnp.where(mask, jax.nn.sigmoid(x_ref[...].astype(jnp.float32)), 0.0)
    t = jnp.where(mask, t_ref[...].astype(jnp.float32), 0.0)

    inter_ref[...] += jnp.sum(p * t, axis=1, keepdims=True)[None, :, :]
    s1_ref[...] += jnp.sum(p, axis=1, keepdims=True)[None, :, :]
    s2_ref[...] += jnp.sum(t, axis=1, keepdims=True)[None, :, :]


@jax.jit
def dice_loss(inputs, targets):
    """DiceLoss.forward: inputs = logits, targets in {0,1}; any shape w/ leading batch."""
    num = inputs.shape[0]
    m1 = inputs.reshape(num, -1)                 # native dtype, reshape is free
    m2 = targets.reshape(num, -1)
    if m2.dtype == jnp.bool_:
        m2 = m2.astype(jnp.int8)                 # 1-byte, Pallas-friendly
    f = m1.shape[1]

    # Feature tile: as wide as the double-buffered VMEM budget allows, capped
    # and lane-aligned; collapse to one full-width block when the whole row fits.
    per_elem = m1.dtype.itemsize + m2.dtype.itemsize
    tf = _BLOCK_BUDGET // max(1, num * per_elem)
    tf = max(128, (tf // 128) * 128)
    tf = min(tf, _TF_MAX)
    if tf >= f:
        tf = f                                   # single block == full feature dim

    total_tiles = pl.cdiv(f, tf)
    ncores = 2 if total_tiles >= 2 else 1        # v7x: 2 TCs; serial loop elsewhere
    tpc = pl.cdiv(total_tiles, ncores)

    kernel = functools.partial(
        _dice_partial_kernel, feat=f, tiles_per_core=tpc, tile_f=tf)

    def in_map(c, k):
        # Clamp so a core's trailing (fully-masked) tiles never index past the
        # array; their contribution is zeroed in-kernel anyway.
        return (0, jnp.minimum(c * tpc + k, total_tiles - 1))

    part = jax.ShapeDtypeStruct((ncores, num, 1), jnp.float32)
    out_map = lambda c, k: (c, 0, 0)             # resident across the reduction axis

    inter_p, s1_p, s2_p = pl.pallas_call(
        kernel,
        out_shape=(part, part, part),
        grid_spec=pltpu.PrefetchScalarGridSpec(
            num_scalar_prefetch=0,
            grid=(ncores, tpc),
            in_specs=[
                pl.BlockSpec((num, tf), in_map),
                pl.BlockSpec((num, tf), in_map),
            ],
            out_specs=(
                pl.BlockSpec((1, num, 1), out_map),
                pl.BlockSpec((1, num, 1), out_map),
                pl.BlockSpec((1, num, 1), out_map),
            ),
        ),
        compiler_params=pltpu.CompilerParams(
            dimension_semantics=("parallel", "arbitrary")),
    )(m1, m2)

    # Tiny epilogue in plain JAX (combine per-core partials + dice score + mean).
    inter = jnp.sum(inter_p, axis=0)[:, 0]
    s1 = jnp.sum(s1_p, axis=0)[:, 0]
    s2 = jnp.sum(s2_p, axis=0)[:, 0]
    dice = (2.0 * inter + SMOOTH) / (s1 + s2 + SMOOTH)
    return 1.0 - jnp.mean(dice)


def _dice_loss_ref(inputs, targets):
    num = inputs.shape[0]
    probs = jax.nn.sigmoid(inputs.astype(jnp.float32))
    m1 = probs.reshape(num, -1)
    m2 = targets.reshape(num, -1).astype(jnp.float32)
    inter = jnp.sum(m1 * m2, axis=1)
    dice = (2.0 * inter + SMOOTH) / (m1.sum(1) + m2.sum(1) + SMOOTH)
    return 1.0 - dice.mean()


if __name__ == "__main__":
    key = jax.random.PRNGKey(0)
    k1, k2, k3, k4, k5, k6 = jax.random.split(key, 6)

    # 1) canonical small NCHW segmentation shape, f32 logits + {0,1} f32 targets.
    x1 = jax.random.normal(k1, (2, 4, 16, 16), dtype=jnp.float32)
    t1 = (jax.random.uniform(k2, (2, 4, 16, 16)) > 0.5).astype(jnp.float32)

    # 2) feature dim not a multiple of 128 -> single full-width (unaligned) block.
    x2 = jax.random.normal(k3, (2, 3, 15, 15), dtype=jnp.float32)
    t2 = (jax.random.uniform(k4, (2, 3, 15, 15)) > 0.5).astype(jnp.float32)

    # 3) multi-tile / two-core path with a partial tail tile, native bf16 logits
    #    and bool targets (exercises in-kernel casting + tail-lane masking).
    x3 = jax.random.normal(k5, (2, 8, 40, 40), dtype=jnp.bfloat16)
    t3 = jax.random.uniform(k6, (2, 8, 40, 40)) > 0.5

    for x, t in ((x1, t1), (x2, t2), (x3, t3)):
        got = jax.block_until_ready(dice_loss(x, t))
        ref = _dice_loss_ref(x, t)
        assert jnp.allclose(got, ref, atol=1e-5, rtol=1e-5), (x.shape, got, ref)

    print("KERNEL_OK")
</pallas_src>

<mosaic_0001>
module attributes {stable_mosaic.version = 11 : i64} {
  func.func @_dice_partial_kernel(%arg0: i32, %arg1: i32, %arg2: memref<2x1024xf32, #tpu.memory_space<vmem>>, %arg3: memref<2x1024xf32, #tpu.memory_space<vmem>>, %arg4: memref<1x2x1xf32, #tpu.memory_space<vmem>>, %arg5: memref<1x2x1xf32, #tpu.memory_space<vmem>>, %arg6: memref<1x2x1xf32, #tpu.memory_space<vmem>>) attributes {dimension_semantics = [#tpu.dimension_semantics<parallel>, #tpu.dimension_semantics<arbitrary>], iteration_bounds = array<i64: 1, 1>, scalar_prefetch = 0 : i64, scratch_operands = 0 : i64, tpu.core_type = #tpu.core_type<tc>, window_params = [{transform_indices = @transform_0, window_bounds = array<i64: 2, 1024>}, {transform_indices = @transform_1, window_bounds = array<i64: 2, 1024>}, {transform_indices = @transform_2, window_bounds = array<i64: 1, 2, 1>}, {transform_indices = @transform_3, window_bounds = array<i64: 1, 2, 1>}, {transform_indices = @transform_4, window_bounds = array<i64: 1, 2, 1>}]} {
    %c0_i32 = arith.constant 0 : i32
    %0 = arith.cmpi eq, %arg1, %c0_i32 : i32
    %1 = arith.extui %0 : i1 to i32
    %c0_i32_0 = arith.constant 0 : i32
    %2 = arith.cmpi ne, %1, %c0_i32_0 : i32
    scf.if %2 {
      %cst_28 = arith.constant 0.000000e+00 : f32
      %41 = vector.broadcast %cst_28 : f32 to vector<1x2x1xf32>
      %c0_29 = arith.constant 0 : index
      %c0_30 = arith.constant 0 : index
      %c0_31 = arith.constant 0 : index
      %42 = vector.load %arg4[%c0_29, %c0_30, %c0_31] : memref<1x2x1xf32, #tpu.memory_space<vmem>>, vector<1x2x1xf32>
      tpu.vector_store %arg4[%c0_29, %c0_30, %c0_31], %41 {strides = array<i32>} : memref<1x2x1xf32, #tpu.memory_space<vmem>>, vector<1x2x1xf32>,
      %cst_32 = arith.constant 0.000000e+00 : f32
      %43 = vector.broadcast %cst_32 : f32 to vector<1x2x1xf32>
      %c0_33 = arith.constant 0 : index
      %c0_34 = arith.constant 0 : index
      %c0_35 = arith.constant 0 : index
      %44 = vector.load %arg5[%c0_33, %c0_34, %c0_35] : memref<1x2x1xf32, #tpu.memory_space<vmem>>, vector<1x2x1xf32>
      tpu.vector_store %arg5[%c0_33, %c0_34, %c0_35], %43 {strides = array<i32>} : memref<1x2x1xf32, #tpu.memory_space<vmem>>, vector<1x2x1xf32>,
      %cst_36 = arith.constant 0.000000e+00 : f32
      %45 = vector.broadcast %cst_36 : f32 to vector<1x2x1xf32>
      %c0_37 = arith.constant 0 : index
      %c0_38 = arith.constant 0 : index
      %c0_39 = arith.constant 0 : index
      %46 = vector.load %arg6[%c0_37, %c0_38, %c0_39] : memref<1x2x1xf32, #tpu.memory_space<vmem>>, vector<1x2x1xf32>
      tpu.vector_store %arg6[%c0_37, %c0_38, %c0_39], %45 {strides = array<i32>} : memref<1x2x1xf32, #tpu.memory_space<vmem>>, vector<1x2x1xf32>,
    } else {
    }
    %c1_i32 = arith.constant 1 : i32
    %3 = arith.muli %arg0, %c1_i32 : i32
    %4 = arith.addi %3, %arg1 : i32
    %c1024_i32 = arith.constant 1024 : i32
    %5 = arith.muli %4, %c1024_i32 : i32
    %6 = tpu.iota {dimensions = array<i32: 1>} : vector<2x1024xi32>
    %7 = vector.broadcast %5 : i32 to vector<2x1024xi32>
    %8 = arith.addi %7, %6 : vector<2x1024xi32>
    %c1024_i32_1 = arith.constant 1024 : i32
    %9 = vector.broadcast %c1024_i32_1 : i32 to vector<2x1024xi32>
    %10 = arith.cmpi slt, %8, %9 : vector<2x1024xi32>
    %c0 = arith.constant 0 : index
    %c0_2 = arith.constant 0 : index
    %11 = vector.load %arg2[%c0, %c0_2] : memref<2x1024xf32, #tpu.memory_space<vmem>>, vector<2x1024xf32>
    %12 = arith.negf %11 : vector<2x1024xf32>
    %13 = math.exp %12 : vector<2x1024xf32>
    %cst = arith.constant 1.000000e+00 : f32
    %14 = vector.broadcast %cst : f32 to vector<2x1024xf32>
    %15 = arith.addf %14, %13 : vector<2x1024xf32>
    %16 = arith.divf %14, %15 : vector<2x1024xf32>
    %cst_3 = arith.constant 0.000000e+00 : f32
    %17 = vector.broadcast %cst_3 : f32 to vector<2x1024xf32>
    %18 = arith.select %10, %16, %17 : vector<2x1024xi1>, vector<2x1024xf32>
    %c0_4 = arith.constant 0 : index
    %c0_5 = arith.constant 0 : index
    %19 = vector.load %arg3[%c0_4, %c0_5] : memref<2x1024xf32, #tpu.memory_space<vmem>>, vector<2x1024xf32>
    %cst_6 = arith.constant 0.000000e+00 : f32
    %20 = vector.broadcast %cst_6 : f32 to vector<2x1024xf32>
    %21 = arith.select %10, %19, %20 : vector<2x1024xi1>, vector<2x1024xf32>
    %c0_7 = arith.constant 0 : index
    %c0_8 = arith.constant 0 : index
    %c0_9 = arith.constant 0 : index
    %22 = vector.load %arg4[%c0_7, %c0_8, %c0_9] : memref<1x2x1xf32, #tpu.memory_space<vmem>>, vector<1x2x1xf32>
    %23 = arith.mulf %18, %21 : vector<2x1024xf32>
    %cst_10 = arith.constant dense<0.000000e+00> : vector<2xf32>
    %24 = vector.multi_reduction <add>, %23, %cst_10 [1] : vector<2x1024xf32> to vector<2xf32>
    %25 = vector.shape_cast %24 : vector<2xf32> to vector<2x1xf32>
    %26 = vector.shape_cast %25 : vector<2x1xf32> to vector<1x2x1xf32>
    %27 = arith.addf %22, %26 : vector<1x2x1xf32>
    %c0_11 = arith.constant 0 : index
    %c0_12 = arith.constant 0 : index
    %c0_13 = arith.constant 0 : index
    %28 = vector.load %arg4[%c0_11, %c0_12, %c0_13] : memref<1x2x1xf32, #tpu.memory_space<vmem>>, vector<1x2x1xf32>
    tpu.vector_store %arg4[%c0_11, %c0_12, %c0_13], %27 {strides = array<i32>} : memref<1x2x1xf32, #tpu.memory_space<vmem>>, vector<1x2x1xf32>,
    %c0_14 = arith.constant 0 : index
    %c0_15 = arith.constant 0 : index
    %c0_16 = arith.constant 0 : index
    %29 = vector.load %arg5[%c0_14, %c0_15, %c0_16] : memref<1x2x1xf32, #tpu.memory_space<vmem>>, vector<1x2x1xf32>
    %cst_17 = arith.constant dense<0.000000e+00> : vector<2xf32>
    %30 = vector.multi_reduction <add>, %18, %cst_17 [1] : vector<2x1024xf32> to vector<2xf32>
    %31 = vector.shape_cast %30 : vector<2xf32> to vector<2x1xf32>
    %32 = vector.shape_cast %31 : vector<2x1xf32> to vector<1x2x1xf32>
    %33 = arith.addf %29, %32 : vector<1x2x1xf32>
    %c0_18 = arith.constant 0 : index
    %c0_19 = arith.constant 0 : index
    %c0_20 = arith.constant 0 : index
    %34 = vector.load %arg5[%c0_18, %c0_19, %c0_20] : memref<1x2x1xf32, #tpu.memory_space<vmem>>, vector<1x2x1xf32>
    tpu.vector_store %arg5[%c0_18, %c0_19, %c0_20], %33 {strides = array<i32>} : memref<1x2x1xf32, #tpu.memory_space<vmem>>, vector<1x2x1xf32>,
    %c0_21 = arith.constant 0 : index
    %c0_22 = arith.constant 0 : index
    %c0_23 = arith.constant 0 : index
    %35 = vector.load %arg6[%c0_21, %c0_22, %c0_23] : memref<1x2x1xf32, #tpu.memory_space<vmem>>, vector<1x2x1xf32>
    %cst_24 = arith.constant dense<0.000000e+00> : vector<2xf32>
    %36 = vector.multi_reduction <add>, %21, %cst_24 [1] : vector<2x1024xf32> to vector<2xf32>
    %37 = vector.shape_cast %36 : vector<2xf32> to vector<2x1xf32>
    %38 = vector.shape_cast %37 : vector<2x1xf32> to vector<1x2x1xf32>
    %39 = arith.addf %35, %38 : vector<1x2x1xf32>
    %c0_25 = arith.constant 0 : index
    %c0_26 = arith.constant 0 : index
    %c0_27 = arith.constant 0 : index
    %40 = vector.load %arg6[%c0_25, %c0_26, %c0_27] : memref<1x2x1xf32, #tpu.memory_space<vmem>>, vector<1x2x1xf32>
    tpu.vector_store %arg6[%c0_25, %c0_26, %c0_27], %39 {strides = array<i32>} : memref<1x2x1xf32, #tpu.memory_space<vmem>>, vector<1x2x1xf32>,
    return
  }
  func.func @transform_0(%arg0: i32, %arg1: i32) -> (i32, i32) {
    %c1_i32 = arith.constant 1 : i32
    %0 = arith.muli %arg0, %c1_i32 : i32
    %1 = arith.addi %0, %arg1 : i32
    %c0_i32 = arith.constant 0 : i32
    %2 = arith.minsi %1, %c0_i32 : i32
    %c0_i32_0 = arith.constant 0 : i32
    %c0_i32_1 = arith.constant 0 : i32
    return %c0_i32_0, %2 : i32, i32
  }
  func.func @transform_1(%arg0: i32, %arg1: i32) -> (i32, i32) {
    %c1_i32 = arith.constant 1 : i32
    %0 = arith.muli %arg0, %c1_i32 : i32
    %1 = arith.addi %0, %arg1 : i32
    %c0_i32 = arith.constant 0 : i32
    %2 = arith.minsi %1, %c0_i32 : i32
    %c0_i32_0 = arith.constant 0 : i32
    %c0_i32_1 = arith.constant 0 : i32
    return %c0_i32_0, %2 : i32, i32
  }
  func.func @transform_2(%arg0: i32, %arg1: i32) -> (i32, i32, i32) {
    %c0_i32 = arith.constant 0 : i32
    %c0_i32_0 = arith.constant 0 : i32
    %c0_i32_1 = arith.constant 0 : i32
    return %arg0, %c0_i32, %c0_i32_0 : i32, i32, i32
  }
  func.func @transform_3(%arg0: i32, %arg1: i32) -> (i32, i32, i32) {
    %c0_i32 = arith.constant 0 : i32
    %c0_i32_0 = arith.constant 0 : i32
    %c0_i32_1 = arith.constant 0 : i32
    return %arg0, %c0_i32, %c0_i32_0 : i32, i32, i32
  }
  func.func @transform_4(%arg0: i32, %arg1: i32) -> (i32, i32, i32) {
    %c0_i32 = arith.constant 0 : i32
    %c0_i32_0 = arith.constant 0 : i32
    %c0_i32_1 = arith.constant 0 : i32
    return %arg0, %c0_i32, %c0_i32_0 : i32, i32, i32
  }
}

</mosaic_0001>

<llo_original>
// kernel: dice_loss.1
$region0: #{dice_loss.1}
  #allocation0 [shape = 'u32[]', space=smem, size = 0x4, offset = 0x4, fixed_abs, tag = 'smem constant byte address 0x4 - core index']
  #allocation1 [shape = 'u32[144,128]{1,0:T(1,128)}', space=vmem, size = 0x12000, scoped, tag = 'internal scratch']
  %s0 = inlined_call_operand.vmem [shape: f32[2,1024], index: 0, kind: input, shape index: {}]
  %s1 = inlined_call_operand.vmem [shape: f32[2,1024], index: 1, kind: input, shape index: {}]
  %s2 = inlined_call_operand.vmem [shape: f32[1,2,1], index: 2, kind: output, shape index: {0}]
  %s3 = inlined_call_operand.vmem [shape: f32[1,2,1], index: 3, kind: output, shape index: {1}]
  %s4 = inlined_call_operand.vmem [shape: f32[1,2,1], index: 4, kind: output, shape index: {2}]
  %5 = xla_tuple %s2, %s3, %s4
  %s6 = sld [smem:[#allocation0]]
  $region38: #{dice_loss.1} parent=0
    _
  %s8 = ssub.s32 1, %s6
  %s9 = scalar_select 0, %s8, %s6
  // Predicated region
  $region2: #{dice_loss.1} parent=0 // pred_check
    _
  $region3: #{dice_loss.1} parent=0 // pred_check_branch
    %11 = sbr.rel (0) target = $region5
  $region4: #{dice_loss.1} parent=0 // pred_region
    %s12 = sadd.s32 0, 0
    %p13 = scmp.lt.s32.totalorder %s12, 0
    %s14 = scalar_select %p13, %s12, 0
    %s15 = smul.u32 8, %s14
    %p16 = scmp.lt.s32.totalorder %s15, 7
    %s17 = scalar_select %p16, %s15, 7
    %s18 = smul.addr %s17, 2
    %s19 = scalar_lea.vmem %s0, %s18
    %s20 = sadd.s32 0, 0
    %p21 = scmp.lt.s32.totalorder %s20, 0
    %s22 = scalar_select %p21, %s20, 0
    %s23 = smul.u32 8, %s22
  $region5: #{dice_loss.1} parent=0 // pred_fallthru
    _
  // Predicated region
  $region6: #{dice_loss.1} parent=0 // pred_check
    _
  $region7: #{dice_loss.1} parent=0 // pred_check_branch
    %25 = sbr.rel (0) target = $region9
  $region8: #{dice_loss.1} parent=0 // pred_region
    %s26 = sadd.s32 0, 0
    %p27 = scmp.lt.s32.totalorder %s26, 0
    %s28 = scalar_select %p27, %s26, 0
    %s29 = smul.u32 8, %s28
    %p30 = scmp.lt.s32.totalorder %s29, 7
    %s31 = scalar_select %p30, %s29, 7
    %s32 = smul.addr %s31, 2
    %s33 = scalar_lea.vmem %s1, %s32
    %s34 = sadd.s32 0, 0
    %p35 = scmp.lt.s32.totalorder %s34, 0
    %s36 = scalar_select %p35, %s34, 0
    %s37 = smul.u32 8, %s36
  $region9: #{dice_loss.1} parent=0 // pred_fallthru
    _
  %s38 = sadd.s32 0, 0
  %p39 = scmp.lt.s32.totalorder %s38, 0
  %s40 = scalar_select %p39, %s38, 0
  %s41 = smul.u32 8, %s40
  %p42 = scmp.lt.s32.totalorder %s41, 7
  %s43 = scalar_select %p42, %s41, 7
  %s44 = smul.addr %s43, 2
  %s45 = scalar_lea.vmem %s0, %s44
  %s46 = sadd.s32 0, 0
  %p47 = scmp.lt.s32.totalorder %s46, 0
  %s48 = scalar_select %p47, %s46, 0
  %s49 = smul.u32 8, %s48
  %p50 = scmp.lt.s32.totalorder %s49, 7
  %s51 = scalar_select %p50, %s49, 7
  %s52 = smul.addr %s51, 2
  %s53 = scalar_lea.vmem %s1, %s52
  %s54 = sadd.s32 0, 0
  %p55 = scmp.lt.s32.totalorder %s54, 0
  %s56 = scalar_select %p55, %s54, 0
  %s57 = smul.u32 8, %s56
  %p58 = scmp.lt.s32.totalorder %s57, 7
  %s59 = scalar_select %p58, %s57, 7
  %s60 = smul.addr %s59, 2
  %s61 = scalar_lea.vmem %s0, %s60
  %s62 = sadd.s32 0, 0
  %p63 = scmp.lt.s32.totalorder %s62, 0
  %s64 = scalar_select %p63, %s62, 0
  %s65 = smul.u32 8, %s64
  %s66 = sadd.s32 0, 0
  %p67 = scmp.lt.s32.totalorder %s66, 0
  %s68 = scalar_select %p67, %s66, 0
  %s69 = smul.u32 8, %s68
  %p70 = scmp.lt.s32.totalorder %s69, 7
  %s71 = scalar_select %p70, %s69, 7
  %s72 = smul.addr %s71, 2
  %s73 = scalar_lea.vmem %s1, %s72
  %s74 = sadd.s32 0, 0
  %p75 = scmp.lt.s32.totalorder %s74, 0
  %s76 = scalar_select %p75, %s74, 0
  %s77 = smul.u32 8, %s76
  %p78 = scmp.eq.s32.totalorder 0, 0
  // Predicated region
  $region10: #{dice_loss.1} parent=0 // pred_check
    %p79 = pneg %p78
  $region11: #{dice_loss.1} parent=0 // pred_check_branch
    %81 = sbr.rel (%p79) target = $region13
  $region12: #{dice_loss.1} parent=0 // pred_region
    %vm82 = vcmask 1024
    %83 = vst.msk [vmem:[%s2] sm:$0x3] %vm82, 0.0
    %84 = vst.msk [vmem:[%s3] sm:$0x3] %vm82, 0.0
    %85 = vst.msk [vmem:[%s4] sm:$0x3] %vm82, 0.0
  $region13: #{dice_loss.1} parent=0 // pred_fallthru
    _
  %s86 = sadd.s32 0, 0
  %s87 = smul.u32 %s86, 1024
  %v88 = vlaneseq
  %v89 = vand.u32 %v88, 127
  %v90 = vadd.s32 %v89, 128
  %v91 = vadd.s32 %v89, 256
  %v92 = vadd.s32 %v89, 384
  %v93 = vadd.s32 %v89, 512
  %v94 = vadd.s32 %v89, 640
  %v95 = vadd.s32 %v89, 768
  %v96 = vadd.s32 %v89, 896
  %v97 = vstv %s87
  %v98 = vadd.s32 %v97, %v89
  %v99 = vadd.s32 %v97, %v90
  %v100 = vadd.s32 %v97, %v91
  %v101 = vadd.s32 %v97, %v92
  %v102 = vadd.s32 %v97, %v93
  %v103 = vadd.s32 %v97, %v94
  %v104 = vadd.s32 %v97, %v95
  %v105 = vadd.s32 %v97, %v96
  %vm106 = vcmp.lt.s32.totalorder %v98, 1024
  %vm107 = vcmp.lt.s32.totalorder %v99, 1024
  %vm108 = vcmp.lt.s32.totalorder %v100, 1024
  %vm109 = vcmp.lt.s32.totalorder %v101, 1024
  %vm110 = vcmp.lt.s32.totalorder %v102, 1024
  %vm111 = vcmp.lt.s32.totalorder %v103, 1024
  %vm112 = vcmp.lt.s32.totalorder %v104, 1024
  %vm113 = vcmp.lt.s32.totalorder %v105, 1024
  %v114 = vld [vmem:[%s61] sm:$0xff]
  %v115 = vld [vmem:[%s61 + $0x8] sm:$0xff]
  %v116 = vxor.u32 %v114, 2147483648
  %v117 = vxor.u32 %v115, 2147483648
  %v118 = vmul.f32 %v116, 1.442695
  %v119 = vpow.pop %v118
  %v120 = vmul.f32 %v117, 1.442695
  %v121 = vpow.pop %v120
  %v122 = vadd.f32 %v119, 1.0
  %v123 = vadd.f32 %v121, 1.0
  %v124 = vrcp.pop %v122
  %v125 = vmul.f32 1.0, %v124
  %v126 = vrcp.pop %v123
  %v127 = vmul.f32 1.0, %v126
  %v130 = vcombine.high %v125, %v125
  %v132 = vunpack.c.l.s4 1983009808
  %v133 = vunpack.c.0.s8 %v132
  %v134 = vlaneseq
  %v135 = vshrl.u32 %v134, 7
  %v136 = vsub.s32 %v133, %v135
  %v137 = vrot.slane %v125, %v136
  %v139 = vunpack.c.l.s4 1983009808
  %v140 = vunpack.c.0.s8 %v139
  %v141 = vlaneseq
  %v142 = vshrl.u32 %v141, 7
  %v143 = vsub.s32 %v140, %v142
  %v144 = vrot.slane %v130, %v143
  %v145 = vcombine.high %v137, %v137
  %v146 = vcombine.high %v144, %v144
  %v147 = vcombine.high %v127, %v127
  %v149 = vunpack.c.l.s4 1983009808
  %v150 = vunpack.c.0.s8 %v149
  %v151 = vlaneseq
  %v152 = vshrl.u32 %v151, 7
  %v153 = vsub.s32 %v150, %v152
  %v154 = vrot.slane %v127, %v153
  %v156 = vunpack.c.l.s4 1983009808
  %v157 = vunpack.c.0.s8 %v156
  %v158 = vlaneseq
  %v159 = vshrl.u32 %v158, 7
  %v160 = vsub.s32 %v157, %v159
  %v161 = vrot.slane %v147, %v160
  %v162 = vcombine.high %v154, %v154
  %v163 = vcombine.high %v161, %v161
  %v172 = vsel %vm106, %v137, 0.0
  %v173 = vsel %vm107, %v145, 0.0
  %v174 = vsel %vm108, %v144, 0.0
  %v175 = vsel %vm109, %v146, 0.0
  %v176 = vsel %vm110, %v154, 0.0
  %v177 = vsel %vm111, %v162, 0.0
  %v178 = vsel %vm112, %v161, 0.0
  %v179 = vsel %vm113, %v163, 0.0
  %v180 = vld [vmem:[%s73] sm:$0xff]
  %v181 = vld [vmem:[%s73 + $0x8] sm:$0xff]
  %v184 = vcombine.high %v180, %v180
  %v186 = vunpack.c.l.s4 1983009808
  %v187 = vunpack.c.0.s8 %v186
  %v188 = vlaneseq
  %v189 = vshrl.u32 %v188, 7
  %v190 = vsub.s32 %v187, %v189
  %v191 = vrot.slane %v180, %v190
  %v193 = vunpack.c.l.s4 1983009808
  %v194 = vunpack.c.0.s8 %v193
  %v195 = vlaneseq
  %v196 = vshrl.u32 %v195, 7
  %v197 = vsub.s32 %v194, %v196
  %v198 = vrot.slane %v184, %v197
  %v199 = vcombine.high %v191, %v191
  %v200 = vcombine.high %v198, %v198
  %v201 = vcombine.high %v181, %v181
  %v203 = vunpack.c.l.s4 1983009808
  %v204 = vunpack.c.0.s8 %v203
  %v205 = vlaneseq
  %v206 = vshrl.u32 %v205, 7
  %v207 = vsub.s32 %v204, %v206
  %v208 = vrot.slane %v181, %v207
  %v210 = vunpack.c.l.s4 1983009808
  %v211 = vunpack.c.0.s8 %v210
  %v212 = vlaneseq
  %v213 = vshrl.u32 %v212, 7
  %v214 = vsub.s32 %v211, %v213
  %v215 = vrot.slane %v201, %v214
  %v216 = vcombine.high %v208, %v208
  %v217 = vcombine.high %v215, %v215
  %v226 = vsel %vm106, %v191, 0.0
  %v227 = vsel %vm107, %v199, 0.0
  %v228 = vsel %vm108, %v198, 0.0
  %v229 = vsel %vm109, %v200, 0.0
  %v230 = vsel %vm110, %v208, 0.0
  %v231 = vsel %vm111, %v216, 0.0
  %v232 = vsel %vm112, %v215, 0.0
  %v233 = vsel %vm113, %v217, 0.0
  %v234 = vld [vmem:[%s2] sm:$0x3]
  %v235 = vmul.f32 %v172, %v226
  %v236 = vmul.f32 %v173, %v227
  %v237 = vmul.f32 %v174, %v228
  %v238 = vmul.f32 %v175, %v229
  %v239 = vmul.f32 %v176, %v230
  %v240 = vmul.f32 %v177, %v231
  %v241 = vmul.f32 %v178, %v232
  %v242 = vmul.f32 %v179, %v233
  %vm243 = vcmask 1041408
  %v244 = vsel %vm243, %v235, 0.0
  %v245 = vsel %vm243, %v236, 0.0
  %v246 = vadd.f32 %v244, %v245
  %v247 = vsel %vm243, %v237, 0.0
  %v248 = vadd.f32 %v246, %v247
  %v249 = vsel %vm243, %v238, 0.0
  %v250 = vadd.f32 %v248, %v249
  %v251 = vsel %vm243, %v239, 0.0
  %v252 = vadd.f32 %v250, %v251
  %v253 = vsel %vm243, %v240, 0.0
  %v254 = vadd.f32 %v252, %v253
  %v255 = vsel %vm243, %v241, 0.0
  %v256 = vadd.f32 %v254, %v255
  %v257 = vsel %vm243, %v242, 0.0
  %v258 = vadd.f32 %v256, %v257
  %259 = vadd.xlane.f32.xlu0 %v258
  %v260 = vpop.xlane.xlu0 %259
  %v261 = vadd.f32 %v234, %v260
  %vm262 = vcmask 1024
  %263 = vst.msk [vmem:[%s2] sm:$0x3] %vm262, %v261
  %v264 = vld [vmem:[%s3] sm:$0x3]
  %v265 = vsel %vm243, %v172, 0.0
  %v266 = vsel %vm243, %v173, 0.0
  %v267 = vadd.f32 %v265, %v266
  %v268 = vsel %vm243, %v174, 0.0
  %v269 = vadd.f32 %v267, %v268
  %v270 = vsel %vm243, %v175, 0.0
  %v271 = vadd.f32 %v269, %v270
  %v272 = vsel %vm243, %v176, 0.0
  %v273 = vadd.f32 %v271, %v272
  %v274 = vsel %vm243, %v177, 0.0
  %v275 = vadd.f32 %v273, %v274
  %v276 = vsel %vm243, %v178, 0.0
  %v277 = vadd.f32 %v275, %v276
  %v278 = vsel %vm243, %v179, 0.0
  %v279 = vadd.f32 %v277, %v278
  %280 = vadd.xlane.f32.xlu0 %v279
  %v281 = vpop.xlane.xlu0 %280
  %v282 = vadd.f32 %v264, %v281
  %283 = vst.msk [vmem:[%s3] sm:$0x3] %vm262, %v282
  %v284 = vld [vmem:[%s4] sm:$0x3]
  %v285 = vsel %vm243, %v226, 0.0
  %v286 = vsel %vm243, %v227, 0.0
  %v287 = vadd.f32 %v285, %v286
  %v288 = vsel %vm243, %v228, 0.0
  %v289 = vadd.f32 %v287, %v288
  %v290 = vsel %vm243, %v229, 0.0
  %v291 = vadd.f32 %v289, %v290
  %v292 = vsel %vm243, %v230, 0.0
  %v293 = vadd.f32 %v291, %v292
  %v294 = vsel %vm243, %v231, 0.0
  %v295 = vadd.f32 %v293, %v294
  %v296 = vsel %vm243, %v232, 0.0
  %v297 = vadd.f32 %v295, %v296
  %v298 = vsel %vm243, %v233, 0.0
  %v299 = vadd.f32 %v297, %v298
  %300 = vadd.xlane.f32.xlu0 %v299
  %v301 = vpop.xlane.xlu0 %300
  %v302 = vadd.f32 %v284, %v301
  %303 = vst.msk [vmem:[%s4] sm:$0x3] %vm262, %v302
  // Predicated region
  $region14: #{dice_loss.1} parent=0 // pred_check
    _
  $region15: #{dice_loss.1} parent=0 // pred_check_branch
    %305 = sbr.rel (0) target = $region17
  $region16: #{dice_loss.1} parent=0 // pred_region
    _
  $region17: #{dice_loss.1} parent=0 // pred_fallthru
    _
  // Predicated region
  $region18: #{dice_loss.1} parent=0 // pred_check
    _
  $region19: #{dice_loss.1} parent=0 // pred_check_branch
    %307 = sbr.rel (0) target = $region21
  $region20: #{dice_loss.1} parent=0 // pred_region
    _
  $region21: #{dice_loss.1} parent=0 // pred_fallthru
    _
  // Predicated region
  $region22: #{dice_loss.1} parent=0 // pred_check
    _
  $region23: #{dice_loss.1} parent=0 // pred_check_branch
    %309 = sbr.rel (0) target = $region25
  $region24: #{dice_loss.1} parent=0 // pred_region
    _
  $region25: #{dice_loss.1} parent=0 // pred_fallthru
    _
  // Predicated region
  $region26: #{dice_loss.1} parent=0 // pred_check
    _
  $region27: #{dice_loss.1} parent=0 // pred_check_branch
    %311 = sbr.rel (0) target = $region29
  $region28: #{dice_loss.1} parent=0 // pred_region
    _
  $region29: #{dice_loss.1} parent=0 // pred_fallthru
    _
  // Predicated region
  $region30: #{dice_loss.1} parent=0 // pred_check
    _
  $region31: #{dice_loss.1} parent=0 // pred_check_branch
    %313 = sbr.rel (0) target = $region33
  $region32: #{dice_loss.1} parent=0 // pred_region
    _
  $region33: #{dice_loss.1} parent=0 // pred_fallthru
    _
  // Predicated region
  $region34: #{dice_loss.1} parent=0 // pred_check
    _
  $region35: #{dice_loss.1} parent=0 // pred_check_branch
    %315 = sbr.rel (0) target = $region37
  $region36: #{dice_loss.1} parent=0 // pred_region
    _
  $region37: #{dice_loss.1} parent=0 // pred_fallthru
    _

</llo_original>
